<compile_context>
chip_gen: v5e
topology: v5e:2x2
jax: 0.10.0
libtpu: 0.0.40
codegen_flags: <defaults>
</compile_context>

<pallas_src>
import functools

import jax
import jax.numpy as jnp
from jax.experimental import pallas as pl
from jax.experimental.pallas import tpu as pltpu


_LANE = 128     # lane width: final-output last-dim padding granularity (lane-dense vst)
_SUBLANE = 8    # f32 sublane count: batch padding / tile granularity
_VMEM_BUDGET = 64 * 1024 * 1024   # v7x physical ceiling (smallest across v5e/v6e/v7x)


def _round_up(x, m):
    return (x + m - 1) // m * m


def _pick_tm(b_pad):
    """Largest batch tile (multiple of 8) that divides the padded batch."""
    for t in (512, 256, 128, 64, 32, 16, 8):
        if b_pad % t == 0:
            return t
    return _SUBLANE


def _fused_mlp_kernel(*refs, n_layers, activation):
    """Entire MLP for one batch tile.

    refs = (x_ref, w0_ref, b0_ref, w1_ref, b1_ref, ..., o_ref)
    Weights/biases are whole arrays resident in VMEM (constant index_map); x/out are
    (tm, ...) tiles. Intermediate activations are plain values (vregs) -- they never
    touch HBM.
    """
    x_ref = refs[0]
    o_ref = refs[-1]
    h = x_ref[...]
    for i in range(n_layers):
        w = refs[1 + 2 * i][...]
        b = refs[2 + 2 * i][...]
        # h cast matches the (possibly pre-cast bf16) weight dtype; f32 accumulate on
        # the MXU; bias add + activation stay f32 on the VPU/EUP (right on all gens).
        acc = jnp.dot(h.astype(w.dtype), w, preferred_element_type=jnp.float32)
        h = acc + b
        if i != n_layers - 1:
            if activation == "relu":
                h = jnp.maximum(h, 0.0)
            else:  # sigmoid (EUP)
                h = jax.nn.sigmoid(h)
    o_ref[...] = h.astype(o_ref.dtype)


def fused_mlp_pallas(x, flat_params, *, n_layers, out_cols, activation,
                     tm, vmem_limit_bytes):
    """Single fused pallas_call with a parallel batch grid.

    x:           (B_pad, K0) f32, B_pad a multiple of tm (tm a multiple of 8).
    flat_params: [w0, b0, w1, b1, ...]; w_i (Ki, Ni), b_i (1, Ni); only the last
                 layer's N is padded to a 128 multiple (lane-dense output store).
    Returns      (B_pad, out_cols) f32.
    """
    b_pad, k0 = x.shape
    grid = (b_pad // tm,)

    in_specs = [pl.BlockSpec((tm, k0), lambda i: (i, 0))]
    for p in flat_params:
        # Whole-array block, constant index_map -> fetched once, stays VMEM-resident
        # across grid steps (no re-DMA on unchanged block index).
        in_specs.append(pl.BlockSpec(p.shape, lambda i: (0, 0)))
    out_specs = pl.BlockSpec((tm, out_cols), lambda i: (i, 0))

    kernel = functools.partial(_fused_mlp_kernel, n_layers=n_layers,
                               activation=activation)
    return pl.pallas_call(
        kernel,
        out_shape=jax.ShapeDtypeStruct((b_pad, out_cols), jnp.float32),
        grid=grid,
        in_specs=in_specs,
        out_specs=out_specs,
        compiler_params=pltpu.CompilerParams(
            dimension_semantics=("parallel",),
            vmem_limit_bytes=vmem_limit_bytes),
    )(x, *flat_params)


class SimpleMLPPallas:
    """Mirrors SimpleMLP(input_dim, hidden_dims, output_dim, activation).

    Weights stored transposed to (in, out); only the final layer's out-dim is
    zero-padded to a 128 multiple (exact math: zero weight cols + zero bias).
    Forward runs one fused Pallas kernel with a parallel batch grid.
    """

    def __init__(self, input_dim, hidden_dims, output_dim, activation="relu",
                 key=None, use_bf16=False):
        assert activation in ("relu", "sigmoid")
        if key is None:
            key = jax.random.PRNGKey(0)
        dims = [input_dim] + list(hidden_dims) + [output_dim]
        self.dims = dims
        self.n_layers = len(dims) - 1
        self.output_dim = output_dim
        self.activation = activation
        self.use_bf16 = use_bf16
        self._out_pad = _round_up(output_dim, _LANE)

        w_dtype = jnp.bfloat16 if use_bf16 else jnp.float32
        self.params = []        # un-padded f32 (for the pure-JAX reference)
        self.flat_params = []   # kernel operands (last-layer N padded, maybe bf16 W)
        for i in range(self.n_layers):
            fan_in, fan_out = dims[i], dims[i + 1]
            key, kw, kb = jax.random.split(key, 3)
            bound = 1.0 / (fan_in ** 0.5)  # PyTorch nn.Linear default init range
            w = jax.random.uniform(kw, (fan_in, fan_out), jnp.float32, -bound, bound)
            b = jax.random.uniform(kb, (fan_out,), jnp.float32, -bound, bound)
            self.params.append((w, b))

            if i == self.n_layers - 1:
                n_cols = self._out_pad   # lane-dense final store
            else:
                n_cols = fan_out         # no interior padding (Mosaic pads layout)
            w_k = jnp.zeros((fan_in, n_cols), jnp.float32).at[:, :fan_out].set(w)
            b_k = jnp.zeros((1, n_cols), jnp.float32).at[0, :fan_out].set(b)
            # Pre-cast weights once (bf16 MXU inputs on v5e/v6e/v7x); bias stays f32.
            self.flat_params += [w_k.astype(w_dtype), b_k]

        self._param_bytes = sum(int(p.size) * p.dtype.itemsize
                                for p in self.flat_params)

    def _vmem_limit(self, tm):
        k0 = self.dims[0]
        widest = max(self.dims[1:-1] + [self._out_pad, k0])
        # resident params + double-buffered x/out tiles + rough live-activation slack
        io_bytes = 2 * 4 * tm * (k0 + self._out_pad)
        act_bytes = 2 * 4 * tm * widest
        needed = self._param_bytes + io_bytes + act_bytes
        assert needed < _VMEM_BUDGET, (
            f"MLP does not fit the whole-in-VMEM fused kernel ({needed} B > "
            f"{_VMEM_BUDGET} B budget); switch to the tiled (M,N,K) structure "
            f"(tn=tk=256 on v6e/v7x, 128 on v5e) described in the NOTE.")
        return min(_VMEM_BUDGET, max(32 * 1024 * 1024, 2 * needed))

    def __call__(self, x):
        B, K = x.shape
        assert K == self.dims[0]
        x = x.astype(jnp.float32)
        B_pad = _round_up(B, _SUBLANE)
        if B_pad != B:
            # Only the batch dim, only when misaligned (no per-call feature padding).
            x = jnp.pad(x, ((0, B_pad - B), (0, 0)))
        tm = _pick_tm(B_pad)
        out_pad = fused_mlp_pallas(
            x, self.flat_params,
            n_layers=self.n_layers, out_cols=self._out_pad,
            activation=self.activation, tm=tm,
            vmem_limit_bytes=self._vmem_limit(tm),
        )
        return out_pad[:B, :self.output_dim]

    def reference(self, x):
        # Pure-JAX f32 reference for correctness checking (un-padded params).
        h = x
        for i, (w, b) in enumerate(self.params):
            h = h @ w + b
            if i != self.n_layers - 1:
                h = jnp.maximum(h, 0.0) if self.activation == "relu" else jax.nn.sigmoid(h)
        return h


if __name__ == "__main__":
    key = jax.random.PRNGKey(0)
    k_x, k_p1, k_p2 = jax.random.split(key, 3)

    batch = 8
    input_dim = 16
    hidden_dims = [32, 32]
    output_dim = 8

    x = jax.random.normal(k_x, (batch, input_dim), jnp.float32)

    # f32 path, ReLU
    model = SimpleMLPPallas(input_dim, hidden_dims, output_dim,
                            activation="relu", key=k_p1, use_bf16=False)
    out = jax.block_until_ready(model(x))
    ref = model.reference(x)
    assert out.shape == (batch, output_dim)
    assert jnp.allclose(out, ref, atol=1e-5, rtol=1e-5), "relu mismatch vs reference"

    # f32 path, Sigmoid (exercises the padded-output / activation path)
    model_s = SimpleMLPPallas(input_dim, hidden_dims, output_dim,
                              activation="sigmoid", key=k_p2, use_bf16=False)
    out_s = jax.block_until_ready(model_s(x))
    ref_s = model_s.reference(x)
    assert jnp.allclose(out_s, ref_s, atol=1e-5, rtol=1e-5), "sigmoid mismatch vs reference"

    # bf16-weight path: looser tolerance against the f32 reference (bf16 MXU inputs).
    model_b = SimpleMLPPallas(input_dim, hidden_dims, output_dim,
                              activation="relu", key=k_p1, use_bf16=True)
    out_b = jax.block_until_ready(model_b(x))
    ref_b = model_b.reference(x)
    assert jnp.allclose(out_b, ref_b, atol=3e-2, rtol=3e-2), "bf16 mismatch vs reference"

    print("KERNEL_OK")
</pallas_src>

<mosaic_0001>
module attributes {stable_mosaic.version = 11 : i64} {
  func.func @_fused_mlp_kernel(%arg0: i32, %arg1: memref<8x16xf32, #tpu.memory_space<vmem>>, %arg2: memref<16x32xf32, #tpu.memory_space<vmem>>, %arg3: memref<1x32xf32, #tpu.memory_space<vmem>>, %arg4: memref<32x32xf32, #tpu.memory_space<vmem>>, %arg5: memref<1x32xf32, #tpu.memory_space<vmem>>, %arg6: memref<32x128xf32, #tpu.memory_space<vmem>>, %arg7: memref<1x128xf32, #tpu.memory_space<vmem>>, %arg8: memref<8x128xf32, #tpu.memory_space<vmem>>) attributes {dimension_semantics = [#tpu.dimension_semantics<parallel>], iteration_bounds = array<i64: 1>, scalar_prefetch = 0 : i64, scratch_operands = 0 : i64, tpu.core_type = #tpu.core_type<tc>, window_params = [{transform_indices = @transform_0, window_bounds = array<i64: 8, 16>}, {pipeline_mode = #tpu.pipeline_mode<synchronous>, transform_indices = @transform_1, window_bounds = array<i64: 16, 32>}, {pipeline_mode = #tpu.pipeline_mode<synchronous>, transform_indices = @transform_2, window_bounds = array<i64: 1, 32>}, {pipeline_mode = #tpu.pipeline_mode<synchronous>, transform_indices = @transform_3, window_bounds = array<i64: 32, 32>}, {pipeline_mode = #tpu.pipeline_mode<synchronous>, transform_indices = @transform_4, window_bounds = array<i64: 1, 32>}, {pipeline_mode = #tpu.pipeline_mode<synchronous>, transform_indices = @transform_5, window_bounds = array<i64: 32, 128>}, {pipeline_mode = #tpu.pipeline_mode<synchronous>, transform_indices = @transform_6, window_bounds = array<i64: 1, 128>}, {transform_indices = @transform_7, window_bounds = array<i64: 8, 128>}]} {
    %c0 = arith.constant 0 : index
    %c0_0 = arith.constant 0 : index
    %0 = vector.load %arg1[%c0, %c0_0] : memref<8x16xf32, #tpu.memory_space<vmem>>, vector<8x16xf32>
    %c0_1 = arith.constant 0 : index
    %c0_2 = arith.constant 0 : index
    %1 = vector.load %arg2[%c0_1, %c0_2] : memref<16x32xf32, #tpu.memory_space<vmem>>, vector<16x32xf32>
    %c0_3 = arith.constant 0 : index
    %c0_4 = arith.constant 0 : index
    %2 = vector.load %arg3[%c0_3, %c0_4] : memref<1x32xf32, #tpu.memory_space<vmem>>, vector<1x32xf32>
    %cst = arith.constant dense<0.000000e+00> : vector<8x32xf32>
    %3 = tpu.matmul %0, %1, %cst {dimension_numbers = #tpu.dot_dimension_numbers<[1], [0], [0], [1], [0, 0, 1, 1], [], []>} : vector<8x16xf32>, vector<16x32xf32>, vector<8x32xf32> -> vector<8x32xf32>
    %4 = vector.broadcast %2 : vector<1x32xf32> to vector<8x32xf32>
    %5 = arith.addf %3, %4 : vector<8x32xf32>
    %cst_5 = arith.constant 0.000000e+00 : f32
    %6 = vector.broadcast %cst_5 : f32 to vector<8x32xf32>
    %7 = arith.maximumf %5, %6 : vector<8x32xf32>
    %c0_6 = arith.constant 0 : index
    %c0_7 = arith.constant 0 : index
    %8 = vector.load %arg4[%c0_6, %c0_7] : memref<32x32xf32, #tpu.memory_space<vmem>>, vector<32x32xf32>
    %c0_8 = arith.constant 0 : index
    %c0_9 = arith.constant 0 : index
    %9 = vector.load %arg5[%c0_8, %c0_9] : memref<1x32xf32, #tpu.memory_space<vmem>>, vector<1x32xf32>
    %cst_10 = arith.constant dense<0.000000e+00> : vector<8x32xf32>
    %10 = tpu.matmul %7, %8, %cst_10 {dimension_numbers = #tpu.dot_dimension_numbers<[1], [0], [0], [1], [0, 0, 1, 1], [], []>} : vector<8x32xf32>, vector<32x32xf32>, vector<8x32xf32> -> vector<8x32xf32>
    %11 = vector.broadcast %9 : vector<1x32xf32> to vector<8x32xf32>
    %12 = arith.addf %10, %11 : vector<8x32xf32>
    %cst_11 = arith.constant 0.000000e+00 : f32
    %13 = vector.broadcast %cst_11 : f32 to vector<8x32xf32>
    %14 = arith.maximumf %12, %13 : vector<8x32xf32>
    %c0_12 = arith.constant 0 : index
    %c0_13 = arith.constant 0 : index
    %15 = vector.load %arg6[%c0_12, %c0_13] : memref<32x128xf32, #tpu.memory_space<vmem>>, vector<32x128xf32>
    %c0_14 = arith.constant 0 : index
    %c0_15 = arith.constant 0 : index
    %16 = vector.load %arg7[%c0_14, %c0_15] : memref<1x128xf32, #tpu.memory_space<vmem>>, vector<1x128xf32>
    %cst_16 = arith.constant dense<0.000000e+00> : vector<8x128xf32>
    %17 = tpu.matmul %14, %15, %cst_16 {dimension_numbers = #tpu.dot_dimension_numbers<[1], [0], [0], [1], [0, 0, 1, 1], [], []>} : vector<8x32xf32>, vector<32x128xf32>, vector<8x128xf32> -> vector<8x128xf32>
    %18 = vector.broadcast %16 : vector<1x128xf32> to vector<8x128xf32>
    %19 = arith.addf %17, %18 : vector<8x128xf32>
    %c0_17 = arith.constant 0 : index
    %c0_18 = arith.constant 0 : index
    %20 = vector.load %arg8[%c0_17, %c0_18] : memref<8x128xf32, #tpu.memory_space<vmem>>, vector<8x128xf32>
    tpu.vector_store %arg8[%c0_17, %c0_18], %19 {strides = array<i32>} : memref<8x128xf32, #tpu.memory_space<vmem>>, vector<8x128xf32>,
    return
  }
  func.func @transform_0(%arg0: i32) -> (i32, i32) {
    %c0_i32 = arith.constant 0 : i32
    %c0_i32_0 = arith.constant 0 : i32
    return %arg0, %c0_i32 : i32, i32
  }
  func.func @transform_1(%arg0: i32) -> (i32, i32) {
    %c0_i32 = arith.constant 0 : i32
    %c0_i32_0 = arith.constant 0 : i32
    %c0_i32_1 = arith.constant 0 : i32
    return %c0_i32, %c0_i32_0 : i32, i32
  }
  func.func @transform_2(%arg0: i32) -> (i32, i32) {
    %c0_i32 = arith.constant 0 : i32
    %c0_i32_0 = arith.constant 0 : i32
    %c0_i32_1 = arith.constant 0 : i32
    return %c0_i32, %c0_i32_0 : i32, i32
  }
  func.func @transform_3(%arg0: i32) -> (i32, i32) {
    %c0_i32 = arith.constant 0 : i32
    %c0_i32_0 = arith.constant 0 : i32
    %c0_i32_1 = arith.constant 0 : i32
    return %c0_i32, %c0_i32_0 : i32, i32
  }
  func.func @transform_4(%arg0: i32) -> (i32, i32) {
    %c0_i32 = arith.constant 0 : i32
    %c0_i32_0 = arith.constant 0 : i32
    %c0_i32_1 = arith.constant 0 : i32
    return %c0_i32, %c0_i32_0 : i32, i32
  }
  func.func @transform_5(%arg0: i32) -> (i32, i32) {
    %c0_i32 = arith.constant 0 : i32
    %c0_i32_0 = arith.constant 0 : i32
    %c0_i32_1 = arith.constant 0 : i32
    return %c0_i32, %c0_i32_0 : i32, i32
  }
  func.func @transform_6(%arg0: i32) -> (i32, i32) {
    %c0_i32 = arith.constant 0 : i32
    %c0_i32_0 = arith.constant 0 : i32
    %c0_i32_1 = arith.constant 0 : i32
    return %c0_i32, %c0_i32_0 : i32, i32
  }
  func.func @transform_7(%arg0: i32) -> (i32, i32) {
    %c0_i32 = arith.constant 0 : i32
    %c0_i32_0 = arith.constant 0 : i32
    return %arg0, %c0_i32 : i32, i32
  }
}

</mosaic_0001>

<llo_original>
// kernel: tpu_custom_call.1
$region0: #{tpu_custom_call.1}
  #allocation0 [shape = 'u32[]', space=smem, size = 0x4, offset = 0x4, fixed_abs, tag = 'smem constant byte address 0x4 - core index']
  #allocation1 [shape = 'u32[72,128]{1,0:T(1,128)}', space=vmem, size = 0x9000, scoped, tag = 'internal scratch']
  %s0 = inlined_call_operand.hbm [shape: f32[8,16], index: 0, kind: input, shape index: {}]
  %s1 = inlined_call_operand.hbm [shape: f32[16,32], index: 1, kind: input, shape index: {}]
  %s2 = inlined_call_operand.vmem [shape: f32[1,32], index: 2, kind: input, shape index: {}]
  %s3 = inlined_call_operand.hbm [shape: f32[32,32], index: 3, kind: input, shape index: {}]
  %s4 = inlined_call_operand.vmem [shape: f32[1,32], index: 4, kind: input, shape index: {}]
  %s5 = inlined_call_operand.hbm [shape: f32[32,128], index: 5, kind: input, shape index: {}]
  %s6 = inlined_call_operand.vmem [shape: f32[1,128], index: 6, kind: input, shape index: {}]
  %s7 = inlined_call_operand.hbm [shape: f32[8,128], index: 7, kind: output, shape index: {}]
  %s8 = sld [smem:[#allocation0]]
  $region54: #{tpu_custom_call.1} parent=0
    _
  %s10 = ssub.s32 1, %s8
  %s11 = scalar_select 0, %s10, %s8
  $region1: #{tpu_custom_call.1} parent=0
    #allocation2 [shape = 'u8[4096]{0}', space=vmem, size = 0x1000, scoped, tag = 'input window, operand 0, single buffered']
    #allocation3 [shape = 's32[1]{0}', space=sflag, size = 0x4, scoped, tag = 'scoped memory for tpu_custom_call.1']
    #allocation4 [shape = 's32[1]{0}', space=sflag, size = 0x4, scoped, tag = 'scoped memory for tpu_custom_call.1']
    #allocation5 [shape = 'u8[8192]{0}', space=vmem, size = 0x2000, scoped, tag = 'input window, operand 1, single buffered']
    #allocation6 [shape = 's32[1]{0}', space=sflag, size = 0x4, scoped, tag = 'scoped memory for tpu_custom_call.1']
    #allocation7 [shape = 'u8[16384]{0}', space=vmem, size = 0x4000, scoped, tag = 'input window, operand 3, single buffered']
    #allocation8 [shape = 'u8[16384]{0}', space=vmem, size = 0x4000, scoped, tag = 'input window, operand 5, single buffered']
    #allocation9 [shape = 's32[1]{0}', space=sflag, size = 0x4, scoped, tag = 'scoped memory for tpu_custom_call.1']
    #allocation10 [shape = 'u8[4096]{0}', space=vmem, size = 0x1000, scoped, tag = 'output window, operand 0, single buffered']
    %12 = vsyncpa [#allocation3], 0
    %13 = vsyncpa [#allocation6], 0
    %14 = vsyncpa [#allocation9], 0
    %15 = vsyncpa [#allocation4], 0
    // Predicated region
    $region2: #{tpu_custom_call.1} parent=1 // pred_check
      _
    $region3: #{tpu_custom_call.1} parent=1 // pred_check_branch
      %17 = sbr.rel (0) target = $region5
    $region4: #{tpu_custom_call.1} parent=1 // pred_region
      %19 = vsyncadd [#allocation3], 0
      %s21 = sshll.u32 %s0, 4
      %s22 = int_to_ptr.hbm [resolvable:$true] %s21
      %s23 = sshll.u32 [#allocation2], 4
      %s24 = int_to_ptr.vmem [resolvable:$true] %s23
      %26 = dma.hbm_to_vmem [thread:$0]  %s22, 128, %s24, [#allocation3]
    $region5: #{tpu_custom_call.1} parent=1 // pred_fallthru
      _
    // Predicated region
    $region6: #{tpu_custom_call.1} parent=1 // pred_check
      _
    $region7: #{tpu_custom_call.1} parent=1 // pred_check_branch
      %28 = sbr.rel (0) target = $region9
    $region8: #{tpu_custom_call.1} parent=1 // pred_region
      %30 = vsyncadd [#allocation6], 0
      %s31 = sshll.u32 %s1, 4
      %s32 = int_to_ptr.hbm [resolvable:$true] %s31
      %s33 = sshll.u32 [#allocation5], 4
      %s34 = int_to_ptr.vmem [resolvable:$true] %s33
      %39 = dma.hbm_to_vmem [thread:$0]  %s32, 256, %s34, [#allocation6], 128, 128, 8
    $region9: #{tpu_custom_call.1} parent=1 // pred_fallthru
      _
    // Predicated region
    $region10: #{tpu_custom_call.1} parent=1 // pred_check
      _
    $region11: #{tpu_custom_call.1} parent=1 // pred_check_branch
      %41 = sbr.rel (0) target = $region13
    $region12: #{tpu_custom_call.1} parent=1 // pred_region
      _
    $region13: #{tpu_custom_call.1} parent=1 // pred_fallthru
      _
    // Predicated region
    $region14: #{tpu_custom_call.1} parent=1 // pred_check
      _
    $region15: #{tpu_custom_call.1} parent=1 // pred_check_branch
      %43 = sbr.rel (0) target = $region17
    $region16: #{tpu_custom_call.1} parent=1 // pred_region
      %45 = vsyncadd [#allocation6], 0
      %s46 = sshll.u32 %s3, 4
      %s47 = int_to_ptr.hbm [resolvable:$true] %s46
      %s48 = sshll.u32 [#allocation7], 4
      %s49 = int_to_ptr.vmem [resolvable:$true] %s48
      %54 = dma.hbm_to_vmem [thread:$0]  %s47, 512, %s49, [#allocation6], 128, 128, 8
    $region17: #{tpu_custom_call.1} parent=1 // pred_fallthru
      _
    // Predicated region
    $region18: #{tpu_custom_call.1} parent=1 // pred_check
      _
    $region19: #{tpu_custom_call.1} parent=1 // pred_check_branch
      %56 = sbr.rel (0) target = $region21
    $region20: #{tpu_custom_call.1} parent=1 // pred_region
      _
    $region21: #{tpu_custom_call.1} parent=1 // pred_fallthru
      _
    // Predicated region
    $region22: #{tpu_custom_call.1} parent=1 // pred_check
      _
    $region23: #{tpu_custom_call.1} parent=1 // pred_check_branch
      %58 = sbr.rel (0) target = $region25
    $region24: #{tpu_custom_call.1} parent=1 // pred_region
      %60 = vsyncadd [#allocation9], 0
      %s61 = sshll.u32 %s5, 4
      %s62 = int_to_ptr.hbm [resolvable:$true] %s61
      %s63 = sshll.u32 [#allocation8], 4
      %s64 = int_to_ptr.vmem [resolvable:$true] %s63
      %69 = dma.hbm_to_vmem [thread:$0]  %s62, 512, %s64, [#allocation9], 128, 128, 8
    $region25: #{tpu_custom_call.1} parent=1 // pred_fallthru
      _
    // Predicated region
    $region26: #{tpu_custom_call.1} parent=1 // pred_check
      _
    $region27: #{tpu_custom_call.1} parent=1 // pred_check_branch
      %71 = sbr.rel (0) target = $region29
    $region28: #{tpu_custom_call.1} parent=1 // pred_region
      _
    $region29: #{tpu_custom_call.1} parent=1 // pred_fallthru
      _
    // Predicated region
    $region30: #{tpu_custom_call.1} parent=1 // pred_check
      _
    $region31: #{tpu_custom_call.1} parent=1 // pred_check_branch
      %73 = sbr.rel (0) target = $region33
    $region32: #{tpu_custom_call.1} parent=1 // pred_region
      %75 = dma.done [#allocation3], 128
    $region33: #{tpu_custom_call.1} parent=1 // pred_fallthru
      _
    // Predicated region
    $region34: #{tpu_custom_call.1} parent=1 // pred_check
      _
    $region35: #{tpu_custom_call.1} parent=1 // pred_check_branch
      %77 = sbr.rel (0) target = $region37
    $region36: #{tpu_custom_call.1} parent=1 // pred_region
      %79 = dma.done [#allocation6], 256
    $region37: #{tpu_custom_call.1} parent=1 // pred_fallthru
      _
    // Predicated region
    $region38: #{tpu_custom_call.1} parent=1 // pred_check
      _
    $region39: #{tpu_custom_call.1} parent=1 // pred_check_branch
      %81 = sbr.rel (0) target = $region41
    $region40: #{tpu_custom_call.1} parent=1 // pred_region
      %83 = dma.done [#allocation6], 512
    $region41: #{tpu_custom_call.1} parent=1 // pred_fallthru
      _
    // Predicated region
    $region42: #{tpu_custom_call.1} parent=1 // pred_check
      _
    $region43: #{tpu_custom_call.1} parent=1 // pred_check_branch
      %85 = sbr.rel (0) target = $region45
    $region44: #{tpu_custom_call.1} parent=1 // pred_region
      %87 = dma.done [#allocation9], 512
    $region45: #{tpu_custom_call.1} parent=1 // pred_fallthru
      _
    %v88 = vld [vmem:[#allocation2] sm:$0xff]
    %v89 = vld [vmem:[#allocation5] sm:$0xff]
    %v90 = vld [vmem:[#allocation5 + $0x8] sm:$0xff]
    %v91 = vld [vmem:[%s2] sm:$0x1]
    %v93 = vperm.slane %v91, 0
    %vm95 = vcmask 130048
    %v97 = vsel %vm95, %v88, 0
    %99 = vmatpush.msra.mxu0 0.0
    %100 = vmatpush.msra.mxu0 0.0
    %101 = vmatpush.msra.mxu0 0.0
    %102 = vmatpush.msra.mxu0 0.0
    %103 = vmatpush.msra.mxu0 0.0
    %104 = vmatpush.msra.mxu0 0.0
    %105 = vmatpush.msra.mxu0 0.0
    %106 = vmatpush.msra.mxu0 0.0
    %107 = vmatpush.msra.mxu0 0.0
    %108 = vmatpush.msra.mxu0 0.0
    %109 = vmatpush.msra.mxu0 0.0
    %110 = vmatpush.msra.mxu0 0.0
    %111 = vmatpush.msra.mxu0 0.0
    %112 = vmatpush.msra.mxu0 0.0
    %113 = vmatpush.msra.mxu0 %v90
    %114 = vmatpush.msra.mxu0 %v89
    %115 = vmatmul.f32.gmra.mxu0 %v97
    %v116 = vpop.f32.mrf.mxu0
    %v117 = vadd.f32 %v93, %v116
    %118 = vdwg.mxu0
    %v119 = vmax.f32 %v117, 0.0
    %v120 = vld [vmem:[#allocation7] sm:$0xff]
    %v121 = vld [vmem:[#allocation7 + $0x8] sm:$0xff]
    %v122 = vld [vmem:[#allocation7 + $0x10] sm:$0xff]
    %v123 = vld [vmem:[#allocation7 + $0x18] sm:$0xff]
    %v124 = vld [vmem:[%s4] sm:$0x1]
    %v126 = vperm.slane %v124, 0
    %vm128 = vcmask 261120
    %v130 = vsel %vm128, %v119, 0
    %132 = vmatpush.msra.mxu0 0.0
    %133 = vmatpush.msra.mxu0 0.0
    %134 = vmatpush.msra.mxu0 0.0
    %135 = vmatpush.msra.mxu0 0.0
    %136 = vmatpush.msra.mxu0 0.0
    %137 = vmatpush.msra.mxu0 0.0
    %138 = vmatpush.msra.mxu0 0.0
    %139 = vmatpush.msra.mxu0 0.0
    %140 = vmatpush.msra.mxu0 0.0
    %141 = vmatpush.msra.mxu0 0.0
    %142 = vmatpush.msra.mxu0 0.0
    %143 = vmatpush.msra.mxu0 0.0
    %144 = vmatpush.msra.mxu0 %v123
    %145 = vmatpush.msra.mxu0 %v122
    %146 = vmatpush.msra.mxu0 %v121
    %147 = vmatpush.msra.mxu0 %v120
    %148 = vmatmul.f32.gmra.mxu0 %v130
    %v149 = vpop.f32.mrf.mxu0
    %v150 = vadd.f32 %v126, %v149
    %151 = vdwg.mxu0
    %v152 = vmax.f32 %v150, 0.0
    %v153 = vld [vmem:[#allocation8] sm:$0xff]
    %v154 = vld [vmem:[#allocation8 + $0x8] sm:$0xff]
    %v155 = vld [vmem:[#allocation8 + $0x10] sm:$0xff]
    %v156 = vld [vmem:[#allocation8 + $0x18] sm:$0xff]
    %v157 = vld [vmem:[%s6] sm:$0x1]
    %v159 = vperm.slane %v157, 0
    %v162 = vsel %vm128, %v152, 0
    %164 = vmatpush.msra.mxu0 0.0
    %165 = vmatpush.msra.mxu0 0.0
    %166 = vmatpush.msra.mxu0 0.0
    %167 = vmatpush.msra.mxu0 0.0
    %168 = vmatpush.msra.mxu0 0.0
    %169 = vmatpush.msra.mxu0 0.0
    %170 = vmatpush.msra.mxu0 0.0
    %171 = vmatpush.msra.mxu0 0.0
    %172 = vmatpush.msra.mxu0 0.0
    %173 = vmatpush.msra.mxu0 0.0
    %174 = vmatpush.msra.mxu0 0.0
    %175 = vmatpush.msra.mxu0 0.0
    %176 = vmatpush.msra.mxu0 %v156
    %177 = vmatpush.msra.mxu0 %v155
    %178 = vmatpush.msra.mxu0 %v154
    %179 = vmatpush.msra.mxu0 %v153
    %180 = vmatmul.f32.gmra.mxu0 %v162
    %v181 = vpop.f32.mrf.mxu0
    %v182 = vadd.f32 %v159, %v181
    %183 = vdwg.mxu0
    %184 = vst [vmem:[#allocation10] sm:$0xff] %v182
    // Predicated region
    $region46: #{tpu_custom_call.1} parent=1 // pred_check
      _
    $region47: #{tpu_custom_call.1} parent=1 // pred_check_branch
      %186 = sbr.rel (0) target = $region49
    $region48: #{tpu_custom_call.1} parent=1 // pred_region
      %188 = vsyncadd [#allocation4], 0
      %s190 = sshll.u32 [#allocation10], 4
      %s191 = int_to_ptr.vmem [resolvable:$true] %s190
      %s192 = sshll.u32 %s7, 4
      %s193 = int_to_ptr.hbm [resolvable:$true] %s192
      %195 = dma.vmem_to_hbm [thread:$0]  %s191, 128, %s193, [#allocation4]
    $region49: #{tpu_custom_call.1} parent=1 // pred_fallthru
      _
    // Predicated region
    $region50: #{tpu_custom_call.1} parent=1 // pred_check
      _
    $region51: #{tpu_custom_call.1} parent=1 // pred_check_branch
      %197 = sbr.rel (0) target = $region53
    $region52: #{tpu_custom_call.1} parent=1 // pred_region
      %199 = dma.done [#allocation4], 128
    $region53: #{tpu_custom_call.1} parent=1 // pred_fallthru
      _
    %200 = vsyncpa [#allocation3], 1
    %201 = vsyncpa [#allocation6], 1
    %202 = vsyncpa [#allocation9], 1
    %203 = vsyncpa [#allocation4], 1

</llo_original>
